<compile_context>
chip_gen: v7x
topology: tpu7x:2x2x1
jax: 0.10.0
libtpu: 0.0.40
codegen_flags: <defaults>
</compile_context>

<pallas_src>
import functools

import jax
import jax.numpy as jnp
import numpy as np
from jax.experimental import pallas as pl
from jax.experimental.pallas import tpu as pltpu


def _bilinear_weight_matrix(out_size: int, in_size: int) -> np.ndarray:
    """Dense (out_size, in_size) row-stochastic bilinear weights.

    Matches PyTorch F.interpolate(mode='bilinear', align_corners=False):
      src = max((i + 0.5) * in/out - 0.5, 0)
      i0  = floor(src), i1 = min(i0 + 1, in - 1), lam = src - i0
    """
    scale = in_size / out_size
    i = np.arange(out_size, dtype=np.float64)
    src = np.maximum((i + 0.5) * scale - 0.5, 0.0)
    i0 = np.minimum(np.floor(src).astype(np.int64), in_size - 1)
    i1 = np.minimum(i0 + 1, in_size - 1)
    lam = (src - i0).astype(np.float32)
    w = np.zeros((out_size, in_size), dtype=np.float32)
    rows = np.arange(out_size)
    w[rows, i0] += 1.0 - lam
    w[rows, i1] += lam
    return w


def _vmem_bytes(b, h, w, oh, ow, in_dsize, out_dsize, cdsize) -> int:
    """Resident-set estimate for one grid step (what Mosaic actually holds)."""
    x_blk = b * h * w * in_dsize          # input block
    o_blk = b * oh * ow * out_dsize       # output block
    wts = (oh * h + w * ow) * cdsize      # both weight matrices
    t_f32 = b * h * ow * 4                # W-stage f32 accumulator
    tt = b * h * ow * cdsize              # relayout copy in compute dtype
    out_f32 = b * oh * ow * 4             # H-stage f32 accumulator
    x_live = b * h * w * in_dsize         # loaded x value
    return (2 * x_blk + 2 * o_blk + 2 * wts     # pipeline double-buffering
            + x_live + t_f32 + tt + out_f32
            + (1 << 20))                        # Mosaic internal-scratch slack


def _vmem_caps():
    """Generation-aware (physical cap, data budget, Mosaic limit cap)."""
    cap = 64 * 1024 * 1024                # conservative fallback (v7x per-TC)
    try:
        cap = int(pltpu.get_tpu_info().vmem_capacity_bytes)
    except Exception:
        pass
    budget = (cap * 3) // 8               # 24 MiB on v7x, 48 MiB on v5e/v6e
    limit_cap = (cap * 3) // 4            # never hand Mosaic the whole VMEM
    return cap, budget, limit_cap


def _choose_batch(nc, h, w, oh, ow, in_dsize, out_dsize, cdsize, budget) -> int:
    """Largest divisor B of nc whose resident set fits `budget`, keeping
    >= 4 grid steps (DMA/compute pipelining) and preferring an even step
    count (keeps v7x's two TensorCores balanced under 'parallel')."""
    min_steps = 4 if nc >= 4 else 1
    max_b = 256                           # keeps the in-kernel lane concat small
    cands = [b for b in range(1, min(nc, max_b) + 1)
             if nc % b == 0 and nc // b >= min_steps]
    fitting = [b for b in sorted(cands, reverse=True)
               if _vmem_bytes(b, h, w, oh, ow, in_dsize, out_dsize, cdsize)
               <= budget]
    if not fitting:
        # Even a single slice overshoots the budget; run it anyway.
        # TODO(synk): banded OH tiling fallback for very large frames.
        return 1
    b0 = fitting[0]
    if (nc // b0) % 2 and nc // b0 > 1:
        for b in fitting:                 # descending: largest even-step choice
            if (nc // b) % 2 == 0 and 2 * b >= b0:
                return b
    return b0


def _interp_kernel(x_ref, wy_ref, wxt_ref, o_ref, *, batch: int):
    # x_ref:   (1, B*H, W)    B channel slices, rows stacked along sublanes
    # wy_ref:  (OH, H)        row (H -> OH) interpolation weights
    # wxt_ref: (W, OW)        col (W -> OW) interpolation weights, transposed
    # o_ref:   (1, OH, B*OW)  lane-dense output slab
    bh = x_ref.shape[1]
    h = bh // batch

    x2d = x_ref[0]            # (B*H, W), input dtype (bf16 stays bf16)
    wy = wy_ref[...]          # (OH, H),  compute dtype
    wxt = wxt_ref[...]        # (W, OW),  compute dtype

    # W-stage: one MXU matmul with the batch folded into M.
    t = jnp.dot(x2d, wxt, preferred_element_type=jnp.float32)   # (B*H, OW) f32

    # Relayout (B*H, OW) -> (H, B*OW): concatenate the B row-groups along the
    # lane dim so the H-stage is a single matmul with lane-dense N = B*OW.
    t = t.astype(wy.dtype)
    if batch == 1:
        tt = t
    else:
        tt = jnp.concatenate(
            [t[b * h:(b + 1) * h, :] for b in range(batch)], axis=1)

    # H-stage: one MXU matmul; result stored lane-dense.
    out = jnp.dot(wy, tt, preferred_element_type=jnp.float32)   # (OH, B*OW)
    o_ref[0] = out.astype(o_ref.dtype)


@functools.partial(jax.jit, static_argnames=("size",))
def interpolate_bilinear(x: jax.Array, size) -> jax.Array:
    """Pallas equivalent of F.interpolate(x, size, mode='bilinear',
    align_corners=False) for NCHW inputs."""
    if isinstance(size, int):
        size = (size, size)
    n, c, h, w = x.shape
    oh, ow = size
    nc = n * c

    # Compute dtype: keep half-precision inputs packed on the MXU; everything
    # else runs f32.  Accumulation is always f32 via preferred_element_type.
    if jnp.issubdtype(x.dtype, jnp.floating) and x.dtype.itemsize == 2:
        cdt = x.dtype
    else:
        cdt = jnp.float32

    wy = jnp.asarray(_bilinear_weight_matrix(oh, h), dtype=cdt)      # (OH, H)
    wxt = jnp.asarray(_bilinear_weight_matrix(ow, w).T, dtype=cdt)   # (W, OW)

    in_dsize = x.dtype.itemsize
    out_dsize = x.dtype.itemsize
    cdsize = np.dtype(cdt).itemsize

    cap, budget, limit_cap = _vmem_caps()
    b = _choose_batch(nc, h, w, oh, ow, in_dsize, out_dsize, cdsize, budget)
    g = nc // b

    needed = _vmem_bytes(b, h, w, oh, ow, in_dsize, out_dsize, cdsize)
    vmem_limit = min(max(needed + (8 << 20), 32 << 20), limit_cap)
    vmem_limit = max(vmem_limit, needed + (2 << 20))   # rail never below use
    vmem_limit = int(min(vmem_limit, cap - (2 << 20)))

    # (N, C, H, W) -> (G, B*H, W): channel slice nc = g*B + b lands at rows
    # [b*H, (b+1)*H) of block g -- exactly the fold the W-stage matmul needs.
    xb = x.reshape(g, b * h, w)
    kernel = functools.partial(_interp_kernel, batch=b)

    out = pl.pallas_call(
        kernel,
        out_shape=jax.ShapeDtypeStruct((g, oh, b * ow), x.dtype),
        grid_spec=pltpu.PrefetchScalarGridSpec(
            num_scalar_prefetch=0,
            grid=(g,),
            in_specs=[
                pl.BlockSpec((1, b * h, w), lambda i: (i, 0, 0)),
                pl.BlockSpec((oh, h), lambda i: (0, 0)),   # resident weights
                pl.BlockSpec((w, ow), lambda i: (0, 0)),   # resident weights
            ],
            out_specs=pl.BlockSpec((1, oh, b * ow), lambda i: (i, 0, 0)),
        ),
        compiler_params=pltpu.CompilerParams(
            dimension_semantics=("parallel",),
            vmem_limit_bytes=vmem_limit,
        ),
    )(xb, wy, wxt)

    # Un-interleave the lane-dense slab: (G, OH, B*OW) -> (N, C, OH, OW).
    out = out.reshape(g, oh, b, ow).transpose(0, 2, 1, 3)
    return out.reshape(n, c, oh, ow)


def _reference(x, size):
    # Pure-JAX reference via the same separable formulation (f32).
    oh, ow = size
    _, _, h, w = x.shape
    wy = jnp.asarray(_bilinear_weight_matrix(oh, h))
    wx = jnp.asarray(_bilinear_weight_matrix(ow, w))
    return jnp.einsum("oh,nchw,pw->ncop", wy, x.astype(jnp.float32), wx)


if __name__ == "__main__":
    key = jax.random.PRNGKey(0)
    N, C, H, W = 2, 4, 16, 16
    size = (32, 32)  # the module's `self.size`

    x = jax.random.normal(key, (N, C, H, W), dtype=jnp.float32)

    y = interpolate_bilinear(x, size)
    y = jax.block_until_ready(y)

    y_ref = _reference(x, size)
    assert y.shape == (N, C, size[0], size[1]), y.shape
    max_err = float(jnp.max(jnp.abs(y.astype(jnp.float32) - y_ref)))
    assert max_err < 1e-4, max_err

    print("KERNEL_OK")
</pallas_src>

<mosaic_0001>
module attributes {stable_mosaic.version = 11 : i64} {
  func.func @_interp_kernel(%arg0: i32, %arg1: memref<1x32x16xf32, #tpu.memory_space<vmem>>, %arg2: memref<32x16xf32, #tpu.memory_space<vmem>>, %arg3: memref<16x32xf32, #tpu.memory_space<vmem>>, %arg4: memref<1x32x64xf32, #tpu.memory_space<vmem>>) attributes {dimension_semantics = [#tpu.dimension_semantics<parallel>], iteration_bounds = array<i64: 4>, scalar_prefetch = 0 : i64, scratch_operands = 0 : i64, tpu.core_type = #tpu.core_type<tc>, window_params = [{transform_indices = @transform_0, window_bounds = array<i64: 1, 32, 16>}, {pipeline_mode = #tpu.pipeline_mode<synchronous>, transform_indices = @transform_1, window_bounds = array<i64: 32, 16>}, {pipeline_mode = #tpu.pipeline_mode<synchronous>, transform_indices = @transform_2, window_bounds = array<i64: 16, 32>}, {transform_indices = @transform_3, window_bounds = array<i64: 1, 32, 64>}]} {
    %c0 = arith.constant 0 : index
    %c0_0 = arith.constant 0 : index
    %c0_1 = arith.constant 0 : index
    %0 = vector.load %arg1[%c0, %c0_0, %c0_1] : memref<1x32x16xf32, #tpu.memory_space<vmem>>, vector<1x32x16xf32>
    %1 = vector.shape_cast %0 : vector<1x32x16xf32> to vector<32x16xf32>
    %c0_2 = arith.constant 0 : index
    %c0_3 = arith.constant 0 : index
    %2 = vector.load %arg2[%c0_2, %c0_3] : memref<32x16xf32, #tpu.memory_space<vmem>>, vector<32x16xf32>
    %c0_4 = arith.constant 0 : index
    %c0_5 = arith.constant 0 : index
    %3 = vector.load %arg3[%c0_4, %c0_5] : memref<16x32xf32, #tpu.memory_space<vmem>>, vector<16x32xf32>
    %cst = arith.constant dense<0.000000e+00> : vector<32x32xf32>
    %4 = tpu.matmul %1, %3, %cst {dimension_numbers = #tpu.dot_dimension_numbers<[1], [0], [0], [1], [0, 0, 1, 1], [], []>} : vector<32x16xf32>, vector<16x32xf32>, vector<32x32xf32> -> vector<32x32xf32>
    %5 = vector.extract_strided_slice %4 {offsets = [0, 0], sizes = [16, 32], strides = [1, 1]} : vector<32x32xf32> to vector<16x32xf32>
    %6 = vector.extract_strided_slice %4 {offsets = [16, 0], sizes = [16, 32], strides = [1, 1]} : vector<32x32xf32> to vector<16x32xf32>
    %7 = tpu.concatenate %5, %6 in 1 : vector<16x32xf32>, vector<16x32xf32> -> vector<16x64xf32>
    %cst_6 = arith.constant dense<0.000000e+00> : vector<32x64xf32>
    %8 = tpu.matmul %2, %7, %cst_6 {dimension_numbers = #tpu.dot_dimension_numbers<[1], [0], [0], [1], [0, 0, 1, 1], [], []>} : vector<32x16xf32>, vector<16x64xf32>, vector<32x64xf32> -> vector<32x64xf32>
    %c0_7 = arith.constant 0 : index
    %c0_8 = arith.constant 0 : index
    %c0_9 = arith.constant 0 : index
    %9 = vector.load %arg4[%c0_7, %c0_8, %c0_9] : memref<1x32x64xf32, #tpu.memory_space<vmem>>, vector<1x32x64xf32>
    %10 = vector.shape_cast %9 : vector<1x32x64xf32> to vector<32x64xf32>
    %11 = vector.shape_cast %8 : vector<32x64xf32> to vector<1x32x64xf32>
    tpu.vector_store %arg4[%c0_7, %c0_8, %c0_9], %11 {strides = array<i32>} : memref<1x32x64xf32, #tpu.memory_space<vmem>>, vector<1x32x64xf32>,
    return
  }
  func.func @transform_0(%arg0: i32) -> (i32, i32, i32) {
    %c0_i32 = arith.constant 0 : i32
    %c0_i32_0 = arith.constant 0 : i32
    %c0_i32_1 = arith.constant 0 : i32
    return %arg0, %c0_i32, %c0_i32_0 : i32, i32, i32
  }
  func.func @transform_1(%arg0: i32) -> (i32, i32) {
    %c0_i32 = arith.constant 0 : i32
    %c0_i32_0 = arith.constant 0 : i32
    %c0_i32_1 = arith.constant 0 : i32
    return %c0_i32, %c0_i32_0 : i32, i32
  }
  func.func @transform_2(%arg0: i32) -> (i32, i32) {
    %c0_i32 = arith.constant 0 : i32
    %c0_i32_0 = arith.constant 0 : i32
    %c0_i32_1 = arith.constant 0 : i32
    return %c0_i32, %c0_i32_0 : i32, i32
  }
  func.func @transform_3(%arg0: i32) -> (i32, i32, i32) {
    %c0_i32 = arith.constant 0 : i32
    %c0_i32_0 = arith.constant 0 : i32
    %c0_i32_1 = arith.constant 0 : i32
    return %arg0, %c0_i32, %c0_i32_0 : i32, i32, i32
  }
}

</mosaic_0001>

<llo_original>
// kernel: interpolate_bilinear.1
$region0: #{interpolate_bilinear.1}
  #allocation0 [shape = 'u32[]', space=smem, size = 0x4, offset = 0x4, fixed_abs, tag = 'smem constant byte address 0x4 - core index']
  #allocation1 [shape = 'u32[144,128]{1,0:T(1,128)}', space=vmem, size = 0x12000, scoped, tag = 'internal scratch']
  %s0 = inlined_call_operand.hbm [shape: f32[4,32,16], index: 0, kind: input, shape index: {}]
  %s1 = inlined_call_operand.hbm [shape: f32[32,16], index: 1, kind: input, shape index: {}]
  %s2 = inlined_call_operand.hbm [shape: f32[16,32], index: 2, kind: input, shape index: {}]
  %s3 = inlined_call_operand.vmem [shape: f32[4,32,64], index: 3, kind: output, shape index: {}]
  %s4 = sld [smem:[#allocation0]]
  $region57: #{interpolate_bilinear.1} parent=0
    _
  %s6 = ssub.s32 1, %s4
  %s7 = scalar_select 0, %s6, %s4
  $region1: #{interpolate_bilinear.1} parent=0
    #allocation2 [shape = 'u8[32768]{0}', space=vmem, size = 0x8000, scoped, tag = 'input window, operand 0']
    #allocation3 [shape = 's32[2]{0}', space=sflag, size = 0x8, scoped, tag = 'scoped memory for interpolate_bilinear.1']
    #allocation4 [shape = 'u8[16384]{0}', space=vmem, size = 0x4000, scoped, tag = 'input window, operand 1, single buffered']
    #allocation5 [shape = 's32[1]{0}', space=sflag, size = 0x4, scoped, tag = 'scoped memory for interpolate_bilinear.1']
    #allocation6 [shape = 'u8[8192]{0}', space=vmem, size = 0x2000, scoped, tag = 'input window, operand 2, single buffered']
    %8 = vsyncpa [#allocation3], 0
    %s9 = scalar_lea.sflag [#allocation3], 1
    %10 = vsyncpa %s9, 0
    %11 = vsyncpa [#allocation5], 0
    loop: start=0, step=1, limit=6
    $region2: #{interpolate_bilinear.1} parent=1 // loop_pre_header
      _
    $region3: #{interpolate_bilinear.1} parent=1 // loop_header
      %s13 = sphi 0, %s17
      %p14 = scmp.ge.s32.totalorder %s13, 6
      %s23 = sphi 0, %s25
      %s26 = sphi 0, %s23
      %s27 = sphi 0, %s26
      %s43 = sphi 0, %s27
      %s47 = sphi 0, %s47
      %s49 = sphi 0, %s47
      %s50 = sphi 0, %s49
      %s64 = sphi 0, %s50
      %s68 = sphi 0, %s68
      %s70 = sphi 0, %s68
      %s71 = sphi 0, %s70
      %s85 = sphi 0, %s71
      %s91 = sphi 0, %s93
      %s94 = sphi 0, %s91
      %s95 = sphi 0, %s94
      %s111 = sphi 0, %s95
    $region4: #{interpolate_bilinear.1} parent=1 // loop_header_branch
      %16 = sbr.rel (%p14) target = $region8
    $region5: #{interpolate_bilinear.1} parent=1 // loop_body
      %s18 = ssub.s32 %s13, 1
      %s19 = ssub.s32 %s13, 2
      %s20 = sadd.s32 %s13, 1
      %s21 = ssub.s32 %s13, %s20
      %p22 = scmp.eq.s32.totalorder %s21, 0
      %s24 = sadd.s32 %s23, 1
      %s25 = scalar_select %p22, %s23, %s24
      %p28 = pneg %p22
      %p29 = scmp.eq.s32.totalorder %s13, 3
      %p30 = por %p28, %p29
      %p31 = scmp.ne.s32.totalorder %s23, %s26
      %p32 = scmp.eq.s32.totalorder %s13, 0
      %p33 = por %p31, %p32
      %p34 = scmp.ne.s32.totalorder %s23, %s26
      %p35 = scmp.eq.s32.totalorder %s18, 3
      %p36 = por %p34, %p35
      %p37 = scmp.ne.s32.totalorder %s26, %s27
      %p38 = scmp.eq.s32.totalorder %s18, 0
      %p39 = por %p37, %p38
      %p40 = scmp.ne.s32.totalorder %s26, %s27
      %p41 = scmp.eq.s32.totalorder %s19, 3
      %p42 = por %p40, %p41
      %p44 = scmp.ne.s32.totalorder %s27, %s43
      %p45 = scmp.eq.s32.totalorder %s19, 0
      %p46 = por %p44, %p45
      %s48 = sadd.s32 %s47, 1
      %p51 = scmp.eq.s32.totalorder %s13, 3
      %p52 = scmp.ne.s32.totalorder %s47, %s49
      %p53 = scmp.eq.s32.totalorder %s13, 0
      %p54 = por %p52, %p53
      %p55 = scmp.ne.s32.totalorder %s47, %s49
      %p56 = scmp.eq.s32.totalorder %s18, 3
      %p57 = por %p55, %p56
      %p58 = scmp.ne.s32.totalorder %s49, %s50
      %p59 = scmp.eq.s32.totalorder %s18, 0
      %p60 = por %p58, %p59
      %p61 = scmp.ne.s32.totalorder %s49, %s50
      %p62 = scmp.eq.s32.totalorder %s19, 3
      %p63 = por %p61, %p62
      %p65 = scmp.ne.s32.totalorder %s50, %s64
      %p66 = scmp.eq.s32.totalorder %s19, 0
      %p67 = por %p65, %p66
      %s69 = sadd.s32 %s68, 1
      %p72 = scmp.eq.s32.totalorder %s13, 3
      %p73 = scmp.ne.s32.totalorder %s68, %s70
      %p74 = scmp.eq.s32.totalorder %s13, 0
      %p75 = por %p73, %p74
      %p76 = scmp.ne.s32.totalorder %s68, %s70
      %p77 = scmp.eq.s32.totalorder %s18, 3
      %p78 = por %p76, %p77
      %p79 = scmp.ne.s32.totalorder %s70, %s71
      %p80 = scmp.eq.s32.totalorder %s18, 0
      %p81 = por %p79, %p80
      %p82 = scmp.ne.s32.totalorder %s70, %s71
      %p83 = scmp.eq.s32.totalorder %s19, 3
      %p84 = por %p82, %p83
      %p86 = scmp.ne.s32.totalorder %s71, %s85
      %p87 = scmp.eq.s32.totalorder %s19, 0
      %p88 = por %p86, %p87
      %s89 = ssub.s32 %s13, %s20
      %p90 = scmp.eq.s32.totalorder %s89, 0
      %s92 = sadd.s32 %s91, 1
      %s93 = scalar_select %p90, %s91, %s92
      %p96 = pneg %p90
      %p97 = scmp.eq.s32.totalorder %s13, 3
      %p98 = por %p96, %p97
      %p99 = scmp.ne.s32.totalorder %s91, %s94
      %p100 = scmp.eq.s32.totalorder %s13, 0
      %p101 = por %p99, %p100
      %p102 = scmp.ne.s32.totalorder %s91, %s94
      %p103 = scmp.eq.s32.totalorder %s18, 3
      %p104 = por %p102, %p103
      %p105 = scmp.ne.s32.totalorder %s94, %s95
      %p106 = scmp.eq.s32.totalorder %s18, 0
      %p107 = por %p105, %p106
      %p108 = scmp.ne.s32.totalorder %s94, %s95
      %p109 = scmp.eq.s32.totalorder %s19, 3
      %p110 = por %p108, %p109
      %p112 = scmp.ne.s32.totalorder %s95, %s111
      %p113 = scmp.eq.s32.totalorder %s19, 0
      %p114 = por %p112, %p113
      %p115 = scmp.le.s32.totalorder 1, %s13
      %p116 = scmp.lt.s32.totalorder %s13, 5
      %p117 = pnand %p115, %p116
      %p118 = pneg %p117
      // Predicated region
      $region9: #{interpolate_bilinear.1} parent=5 // pred_check
        _
      $region10: #{interpolate_bilinear.1} parent=5 // pred_check_branch
        %120 = sbr.rel (%p117) target = $region12
      $region11: #{interpolate_bilinear.1} parent=5 // pred_region
        %s121 = ssub.s32 %s13, 1
        // Predicated region
        $region13: #{interpolate_bilinear.1} parent=11 // pred_check
          %p122 = pneg %p60
        $region14: #{interpolate_bilinear.1} parent=11 // pred_check_branch
          %124 = sbr.rel (%p122) target = $region16
        $region15: #{interpolate_bilinear.1} parent=11 // pred_region
          %s126 = ssub.s32 512, 512
          %127 = vsyncadd [#allocation5], %s126
          %s128 = sshll.u32 [#allocation4], 4
          %s129 = int_to_ptr.vmem [resolvable:$true] %s128
          %134 = dma.hbm_to_vmem [thread:$0]  %s1, 512, %s129, [#allocation5], 128, 128, 8
        $region16: #{interpolate_bilinear.1} parent=11 // pred_fallthru
          _
        // Predicated region
        $region17: #{interpolate_bilinear.1} parent=11 // pred_check
          %p135 = pneg %p81
        $region18: #{interpolate_bilinear.1} parent=11 // pred_check_branch
          %137 = sbr.rel (%p135) target = $region20
        $region19: #{interpolate_bilinear.1} parent=11 // pred_region
          %s139 = ssub.s32 256, 256
          %140 = vsyncadd [#allocation5], %s139
          %s141 = sshll.u32 [#allocation6], 4
          %s142 = int_to_ptr.vmem [resolvable:$true] %s141
          %147 = dma.hbm_to_vmem [thread:$0]  %s2, 256, %s142, [#allocation5], 128, 128, 8
        $region20: #{interpolate_bilinear.1} parent=11 // pred_fallthru
          _
      $region12: #{interpolate_bilinear.1} parent=5 // pred_fallthru
        _
      %p148 = scmp.lt.s32.totalorder %s13, 4
      // Predicated region
      $region21: #{interpolate_bilinear.1} parent=5 // pred_check
        %p149 = pneg %p148
      $region22: #{interpolate_bilinear.1} parent=5 // pred_check_branch
        %151 = sbr.rel (%p149) target = $region24
      $region23: #{interpolate_bilinear.1} parent=5 // pred_region
        // Predicated region
        $region25: #{interpolate_bilinear.1} parent=23 // pred_check
          %p152 = pneg %p33
        $region26: #{interpolate_bilinear.1} parent=23 // pred_check_branch
          %154 = sbr.rel (%p152) target = $region28
        $region27: #{interpolate_bilinear.1} parent=23 // pred_region
          %s155 = sand.u32 %s23, 1
          %s156 = scalar_lea.sflag [#allocation3], %s155
          %s157 = sand.u32 %s23, 1
          %s158 = smul.addr %s157, 32
          %s159 = scalar_lea.vmem [#allocation2], %s158
          %s161 = ssub.s32 512, 512
          %162 = vsyncadd %s156, %s161
          %s163 = smul.addr %s13, 4
          %s164 = smul.addr %s163, 128
          %s165 = scalar_lea.hbm %s0, %s164
          %s166 = sshll.u32 %s159, 4
          %s167 = int_to_ptr.vmem [resolvable:$true] %s166
          %172 = dma.hbm_to_vmem [thread:$0]  %s165, 512, %s167, %s156, 128, 128, 8
        $region28: #{interpolate_bilinear.1} parent=23 // pred_fallthru
          _
      $region24: #{interpolate_bilinear.1} parent=5 // pred_fallthru
        _
      %p173 = scmp.le.s32.totalorder 1, %s13
      %p174 = scmp.lt.s32.totalorder %s13, 5
      %p175 = pnand %p173, %p174
      %p176 = pneg %p175
      // Predicated region
      $region29: #{interpolate_bilinear.1} parent=5 // pred_check
        _
      $region30: #{interpolate_bilinear.1} parent=5 // pred_check_branch
        %178 = sbr.rel (%p175) target = $region32
      $region31: #{interpolate_bilinear.1} parent=5 // pred_region
        %s179 = ssub.s32 %s13, 1
        %s180 = sand.u32 %s26, 1
        %s181 = scalar_lea.sflag [#allocation3], %s180
        %s182 = sand.u32 %s26, 1
        %s183 = smul.addr %s182, 32
        %s184 = scalar_lea.vmem [#allocation2], %s183
        // Predicated region
        $region33: #{interpolate_bilinear.1} parent=31 // pred_check
          %p185 = pneg %p39
        $region34: #{interpolate_bilinear.1} parent=31 // pred_check_branch
          %187 = sbr.rel (%p185) target = $region36
        $region35: #{interpolate_bilinear.1} parent=31 // pred_region
          %188 = dma.done %s181, 512
        $region36: #{interpolate_bilinear.1} parent=31 // pred_fallthru
          _
        // Predicated region
        $region37: #{interpolate_bilinear.1} parent=31 // pred_check
          %p189 = pneg %p60
        $region38: #{interpolate_bilinear.1} parent=31 // pred_check_branch
          %191 = sbr.rel (%p189) target = $region40
        $region39: #{interpolate_bilinear.1} parent=31 // pred_region
          %192 = dma.done [#allocation5], 512
        $region40: #{interpolate_bilinear.1} parent=31 // pred_fallthru
          _
        // Predicated region
        $region41: #{interpolate_bilinear.1} parent=31 // pred_check
          %p193 = pneg %p81
        $region42: #{interpolate_bilinear.1} parent=31 // pred_check_branch
          %195 = sbr.rel (%p193) target = $region44
        $region43: #{interpolate_bilinear.1} parent=31 // pred_region
          %196 = dma.done [#allocation5], 256
        $region44: #{interpolate_bilinear.1} parent=31 // pred_fallthru
          _
        %s197 = sand.u32 %s26, 1
        %s198 = scalar_lea.sflag [#allocation3], %s197
        %s199 = sand.u32 %s26, 1
        %s200 = smul.addr %s199, 32
        %s201 = scalar_lea.vmem [#allocation2], %s200
        %p202 = pneg %p39
        %p203 = pneg %p36
        %p204 = pneg %p60
        %p205 = pneg %p57
        %p206 = pneg %p81
        %p207 = pneg %p78
        %p208 = pneg %p107
        %p209 = pneg %p104
        %p210 = scmp.lt.s32.totalorder %s18, 3
        %s211 = scalar_select %p210, %s18, 3
        %s212 = smul.addr %s211, 4
        %s213 = smul.addr %s212, 8
        %s214 = scalar_lea.vmem %s3, %s213
        %p215 = scmp.lt.s32.totalorder %s18, 3
        %s216 = scalar_select %p215, %s18, 3
        %s217 = smul.addr %s216, 4
        %s218 = smul.addr %s217, 8
        %s219 = scalar_lea.vmem %s3, %s218
        %v220 = vld [vmem:[%s184] sm:$0xff]
        %v221 = vld [vmem:[%s184 + $0x8] sm:$0xff]
        %v222 = vld [vmem:[%s184 + $0x10] sm:$0xff]
        %v223 = vld [vmem:[%s184 + $0x18] sm:$0xff]
        %v224 = vld [vmem:[#allocation4] sm:$0xff]
        %v225 = vld [vmem:[#allocation4 + $0x8] sm:$0xff]
        %v226 = vld [vmem:[#allocation4 + $0x10] sm:$0xff]
        %v227 = vld [vmem:[#allocation4 + $0x18] sm:$0xff]
        %v228 = vld [vmem:[#allocation6] sm:$0xff]
        %v229 = vld [vmem:[#allocation6 + $0x8] sm:$0xff]
        %vm230 = vcmask 130048
        %v232 = vsel %vm230, %v220, 0
        %v235 = vsel %vm230, %v221, 0
        %v238 = vsel %vm230, %v222, 0
        %v241 = vsel %vm230, %v223, 0
        %243 = vmatprep.subr.mxu0 0.0
        %244 = vmatpush1.msra.mxu0 %v228
        %245 = vmatprep.subr.mxu0 0.0
        %246 = vmatpush1.msra.mxu0 %v229
        %247 = vmatprep.subr.mxu0 0.0
        %248 = vmatpush1.msra.mxu0 0.0
        %249 = vmatprep.subr.mxu0 0.0
        %250 = vmatpush1.msra.mxu0 0.0
        %251 = vmatprep.subr.mxu0 0.0
        %252 = vmatpush1.msra.mxu0 0.0
        %253 = vmatprep.subr.mxu0 0.0
        %254 = vmatpush1.msra.mxu0 0.0
        %255 = vmatprep.subr.mxu0 0.0
        %256 = vmatpush1.msra.mxu0 0.0
        %257 = vmatprep.subr.mxu0 0.0
        %258 = vmatpush1.msra.mxu0 0.0
        %259 = vmatprep.subr.mxu0 0.0
        %260 = vmatpush1.msra.mxu0 0.0
        %261 = vmatprep.subr.mxu0 0.0
        %262 = vmatpush1.msra.mxu0 0.0
        %263 = vmatprep.subr.mxu0 0.0
        %264 = vmatpush1.msra.mxu0 0.0
        %265 = vmatprep.subr.mxu0 0.0
        %266 = vmatpush1.msra.mxu0 0.0
        %267 = vmatprep.subr.mxu0 0.0
        %268 = vmatpush1.msra.mxu0 0.0
        %269 = vmatprep.subr.mxu0 0.0
        %270 = vmatpush1.msra.mxu0 0.0
        %271 = vmatprep.subr.mxu0 0.0
        %272 = vmatpush1.msra.mxu0 0.0
        %273 = vmatprep.subr.mxu0 0.0
        %274 = vmatpush1.msra.mxu0 0.0
        %275 = vmatprep.subr.mxu0 0.0
        %276 = vmatpush1.msra.mxu0 0.0
        %277 = vmatprep.subr.mxu0 0.0
        %278 = vmatpush1.msra.mxu0 0.0
        %279 = vmatprep.subr.mxu0 0.0
        %280 = vmatpush1.msra.mxu0 0.0
        %281 = vmatprep.subr.mxu0 0.0
        %282 = vmatpush1.msra.mxu0 0.0
        %283 = vmatprep.subr.mxu0 0.0
        %284 = vmatpush1.msra.mxu0 0.0
        %285 = vmatprep.subr.mxu0 0.0
        %286 = vmatpush1.msra.mxu0 0.0
        %287 = vmatprep.subr.mxu0 0.0
        %288 = vmatpush1.msra.mxu0 0.0
        %289 = vmatprep.subr.mxu0 0.0
        %290 = vmatpush1.msra.mxu0 0.0
        %291 = vmatprep.subr.mxu0 0.0
        %292 = vmatpush1.msra.mxu0 0.0
        %293 = vmatprep.subr.mxu0 0.0
        %294 = vmatpush1.msra.mxu0 0.0
        %295 = vmatprep.subr.mxu0 0.0
        %296 = vmatpush1.msra.mxu0 0.0
        %297 = vmatprep.subr.mxu0 0.0
        %298 = vmatpush1.msra.mxu0 0.0
        %299 = vmatprep.subr.mxu0 0.0
        %300 = vmatpush1.msra.mxu0 0.0
        %301 = vmatprep.subr.mxu0 0.0
        %302 = vmatpush1.msra.mxu0 0.0
        %303 = vmatprep.subr.mxu0 0.0
        %304 = vmatpush1.msra.mxu0 0.0
        %305 = vmatprep.subr.mxu0 0.0
        %306 = vmatpush1.msra.mxu0 0.0
        %307 = vmatprep.mubr.f32.mxu0 0.0
        %308 = vmatmul.mubr.f32.gmra.mrb[0].mxu0 %v232
        %v309 = vpop.f32.mrb[0].mxu0
        %v310 = vadd.f32 0.0, %v309
        %v311 = vpop.f32.mrb[0].mxu0
        %312 = vmatprep.mubr.f32.mxu0 0.0
        %313 = vmatmul.mubr.f32.gmra.mrb[0].mxu0 %v235
        %v314 = vpop.f32.mrb[0].mxu0
        %v315 = vadd.f32 0.0, %v314
        %v316 = vpop.f32.mrb[0].mxu0
        %317 = vmatprep.mubr.f32.mxu0 0.0
        %318 = vmatmul.mubr.f32.gmra.mrb[0].mxu0 %v238
        %v319 = vpop.f32.mrb[0].mxu0
        %v320 = vadd.f32 0.0, %v319
        %v321 = vpop.f32.mrb[0].mxu0
        %322 = vmatprep.mubr.f32.mxu0 0.0
        %323 = vmatmul.mubr.f32.gmra.mrb[0].mxu0 %v241
        %v324 = vpop.f32.mrb[0].mxu0
        %v325 = vadd.f32 0.0, %v324
        %v326 = vpop.f32.mrb[0].mxu0
        %327 = vdwg.mxu0
        %330 = vrot.lane.b32.xlu0 %v320, 32
        %v331 = vpop.permute.xlu0 %330
        %332 = vrot.lane.b32.xlu0 %v325, 32
        %v333 = vpop.permute.xlu0 %332
        %vm336 = vcmask 261120
        %v337 = vsel %vm336, %v310, %v331
        %v338 = vsel %vm336, %v315, %v333
        %v340 = vsel %vm230, %v224, 0
        %v343 = vsel %vm230, %v225, 0
        %v346 = vsel %vm230, %v226, 0
        %v349 = vsel %vm230, %v227, 0
        %351 = vmatprep.subr.mxu0 0.0
        %352 = vmatpush1.msra.mxu0 %v337
        %353 = vmatprep.subr.mxu0 0.0
        %354 = vmatpush1.msra.mxu0 %v338
        %355 = vmatprep.subr.mxu0 0.0
        %356 = vmatpush1.msra.mxu0 0.0
        %357 = vmatprep.subr.mxu0 0.0
        %358 = vmatpush1.msra.mxu0 0.0
        %359 = vmatprep.subr.mxu0 0.0
        %360 = vmatpush1.msra.mxu0 0.0
        %361 = vmatprep.subr.mxu0 0.0
        %362 = vmatpush1.msra.mxu0 0.0
        %363 = vmatprep.subr.mxu0 0.0
        %364 = vmatpush1.msra.mxu0 0.0
        %365 = vmatprep.subr.mxu0 0.0
        %366 = vmatpush1.msra.mxu0 0.0
        %367 = vmatprep.subr.mxu0 0.0
        %368 = vmatpush1.msra.mxu0 0.0
        %369 = vmatprep.subr.mxu0 0.0
        %370 = vmatpush1.msra.mxu0 0.0
        %371 = vmatprep.subr.mxu0 0.0
        %372 = vmatpush1.msra.mxu0 0.0
        %373 = vmatprep.subr.mxu0 0.0
        %374 = vmatpush1.msra.mxu0 0.0
        %375 = vmatprep.subr.mxu0 0.0
        %376 = vmatpush1.msra.mxu0 0.0
        %377 = vmatprep.subr.mxu0 0.0
        %378 = vmatpush1.msra.mxu0 0.0
        %379 = vmatprep.subr.mxu0 0.0
        %380 = vmatpush1.msra.mxu0 0.0
        %381 = vmatprep.subr.mxu0 0.0
        %382 = vmatpush1.msra.mxu0 0.0
        %383 = vmatprep.subr.mxu0 0.0
        %384 = vmatpush1.msra.mxu0 0.0
        %385 = vmatprep.subr.mxu0 0.0
        %386 = vmatpush1.msra.mxu0 0.0
        %387 = vmatprep.subr.mxu0 0.0
        %388 = vmatpush1.msra.mxu0 0.0
        %389 = vmatprep.subr.mxu0 0.0
        %390 = vmatpush1.msra.mxu0 0.0
        %391 = vmatprep.subr.mxu0 0.0
        %392 = vmatpush1.msra.mxu0 0.0
        %393 = vmatprep.subr.mxu0 0.0
        %394 = vmatpush1.msra.mxu0 0.0
        %395 = vmatprep.subr.mxu0 0.0
        %396 = vmatpush1.msra.mxu0 0.0
        %397 = vmatprep.subr.mxu0 0.0
        %398 = vmatpush1.msra.mxu0 0.0
        %399 = vmatprep.subr.mxu0 0.0
        %400 = vmatpush1.msra.mxu0 0.0
        %401 = vmatprep.subr.mxu0 0.0
        %402 = vmatpush1.msra.mxu0 0.0
        %403 = vmatprep.subr.mxu0 0.0
        %404 = vmatpush1.msra.mxu0 0.0
        %405 = vmatprep.subr.mxu0 0.0
        %406 = vmatpush1.msra.mxu0 0.0
        %407 = vmatprep.subr.mxu0 0.0
        %408 = vmatpush1.msra.mxu0 0.0
        %409 = vmatprep.subr.mxu0 0.0
        %410 = vmatpush1.msra.mxu0 0.0
        %411 = vmatprep.subr.mxu0 0.0
        %412 = vmatpush1.msra.mxu0 0.0
        %413 = vmatprep.subr.mxu0 0.0
        %414 = vmatpush1.msra.mxu0 0.0
        %415 = vmatprep.mubr.f32.mxu0 0.0
        %416 = vmatmul.mubr.f32.gmra.mrb[0].mxu0 %v340
        %v417 = vpop.f32.mrb[0].mxu0
        %v418 = vadd.f32 0.0, %v417
        %v419 = vpop.f32.mrb[0].mxu0
        %420 = vmatprep.mubr.f32.mxu0 0.0
        %421 = vmatmul.mubr.f32.gmra.mrb[0].mxu0 %v343
        %v422 = vpop.f32.mrb[0].mxu0
        %v423 = vadd.f32 0.0, %v422
        %v424 = vpop.f32.mrb[0].mxu0
        %425 = vmatprep.mubr.f32.mxu0 0.0
        %426 = vmatmul.mubr.f32.gmra.mrb[0].mxu0 %v346
        %v427 = vpop.f32.mrb[0].mxu0
        %v428 = vadd.f32 0.0, %v427
        %v429 = vpop.f32.mrb[0].mxu0
        %430 = vmatprep.mubr.f32.mxu0 0.0
        %431 = vmatmul.mubr.f32.gmra.mrb[0].mxu0 %v349
        %v432 = vpop.f32.mrb[0].mxu0
        %v433 = vadd.f32 0.0, %v432
        %v434 = vpop.f32.mrb[0].mxu0
        %435 = vdwg.mxu0
        %vm436 = vcmask 523264
        %437 = vst.msk [vmem:[%s219] sm:$0xff] %vm436, %v418
        %438 = vst.msk [vmem:[%s219 + $0x8] sm:$0xff] %vm436, %v423
        %439 = vst.msk [vmem:[%s219 + $0x10] sm:$0xff] %vm436, %v428
        %440 = vst.msk [vmem:[%s219 + $0x18] sm:$0xff] %vm436, %v433
        %p441 = scmp.lt.s32.totalorder %s18, 3
        %s442 = scalar_select %p441, %s18, 3
        %s443 = smul.addr %s442, 4
        %s444 = smul.addr %s443, 8
        %s445 = scalar_lea.vmem %s3, %s444
        // Predicated region
        $region45: #{interpolate_bilinear.1} parent=31 // pred_check
          %p446 = pneg %p104
        $region46: #{interpolate_bilinear.1} parent=31 // pred_check_branch
          %448 = sbr.rel (%p446) target = $region48
        $region47: #{interpolate_bilinear.1} parent=31 // pred_region
          _
        $region48: #{interpolate_bilinear.1} parent=31 // pred_fallthru
          _
      $region32: #{interpolate_bilinear.1} parent=5 // pred_fallthru
        _
      %p449 = scmp.le.s32.totalorder 2, %s13
      // Predicated region
      $region49: #{interpolate_bilinear.1} parent=5 // pred_check
        %p450 = pneg %p449
      $region50: #{interpolate_bilinear.1} parent=5 // pred_check_branch
        %452 = sbr.rel (%p450) target = $region52
      $region51: #{interpolate_bilinear.1} parent=5 // pred_region
        %s453 = ssub.s32 %s13, 2
        // Predicated region
        $region53: #{interpolate_bilinear.1} parent=51 // pred_check
          %p454 = pneg %p110
        $region54: #{interpolate_bilinear.1} parent=51 // pred_check_branch
          %456 = sbr.rel (%p454) target = $region56
        $region55: #{interpolate_bilinear.1} parent=51 // pred_region
          %p457 = scmp.lt.s32.totalorder %s19, 3
          %s458 = scalar_select %p457, %s19, 3
          %s459 = smul.addr %s458, 4
          %s460 = smul.addr %s459, 8
          %s461 = scalar_lea.vmem %s3, %s460
        $region56: #{interpolate_bilinear.1} parent=51 // pred_fallthru
          _
      $region52: #{interpolate_bilinear.1} parent=5 // pred_fallthru
        _
    $region6: #{interpolate_bilinear.1} parent=1 // loop_footer
      %s17 = sadd.s32 1, %s13
    $region7: #{interpolate_bilinear.1} parent=1 // loop_footer_branch
      %12 = sbr.rel target = $region3
    $region8: #{interpolate_bilinear.1} parent=1 // loop_exit
      _
    %462 = vsyncpa [#allocation3], 1
    %s463 = scalar_lea.sflag [#allocation3], 1
    %464 = vsyncpa %s463, 1
    %465 = vsyncpa [#allocation5], 1

</llo_original>
